<compile_context>
chip_gen: v5e
topology: v5e:2x2
jax: 0.10.0
libtpu: 0.0.40
codegen_flags: <defaults>
</compile_context>

<pallas_src>
import jax
import jax.numpy as jnp
from jax import lax
from jax.experimental import pallas as pl
from jax.experimental.pallas import tpu as pltpu

HIDDEN = 32


def _round_up(n, m):
    return ((n + m - 1) // m) * m


def mlp_kernel(x_ref, w1_ref, b1_ref, w2_ref, b2_ref, w3t_ref, b3t_ref, ot_ref):
    x = x_ref[...]                                            # (tb, state_dim) f32

    # fc1 + ReLU (MXU matmul, f32 accumulation)
    h1 = jnp.dot(x, w1_ref[...], preferred_element_type=jnp.float32)
    h1 = jnp.maximum(h1 + b1_ref[...], 0.0)                   # (tb, 32)

    # fc2 + ReLU
    h2 = jnp.dot(h1, w2_ref[...], preferred_element_type=jnp.float32)
    h2 = jnp.maximum(h2 + b2_ref[...], 0.0)                   # (tb, 32)

    # fc3, produced directly in lane-dense transposed layout:
    #   out_t[a, b] = sum_k w3t[a, k] * h2[b, k]   (i.e. w3t @ h2.T, MXU-native NT)
    out_t = lax.dot_general(
        w3t_ref[...], h2,
        dimension_numbers=(((1,), (1,)), ((), ())),
        preferred_element_type=jnp.float32)                   # (act_dim, tb)

    ot_ref[...] = (out_t + b3t_ref[...]).astype(ot_ref.dtype)


def net_forward(x, params, *, block_batch=8192, transpose_back=True):
    """x: (batch, state_dim) f32.  Returns (batch, act_dim) f32
    (or the raw lane-dense (act_dim, batch) result if transpose_back=False)."""
    w1, b1, w2, b2, w3t, b3t = (
        params["w1"], params["b1"], params["w2"],
        params["b2"], params["w3t"], params["b3t"],
    )
    batch, state_dim = x.shape
    act_dim = w3t.shape[0]

    # --- batch tile selection -------------------------------------------------
    # Tiles are a multiple of 128 (lane dim of the transposed output block) so
    # boundary blocks are legal; a single block covering the exact batch is
    # always legal (full-extent dims are exempt from the (8,128) rule).
    block_batch = _round_up(min(max(block_batch, 128), 32768), 128)
    if batch <= block_batch:
        tb = batch
        if batch >= 4096:
            # Split into >=2 grid steps so "parallel" feeds both TCs on v7x.
            tb = _round_up(pl.cdiv(batch, 2), 128)
    else:
        tb = block_batch
    grid = (pl.cdiv(batch, tb),)

    # --- VMEM budget ----------------------------------------------------------
    # x tile (tb, state_dim) lane-pads to 128 lanes -> tb*512 B per buffer;
    # output tile (act_dim, tb) sublane-pads to 8 -> tb*32 B per buffer.
    # Both are double-buffered by the pipeline; params are ~100 KiB resident.
    vmem_need = 2 * (tb * 128 * 4) + 2 * (8 * tb * 4) + (2 << 20)
    vmem_limit = min(max(vmem_need, 16 << 20), 48 << 20)  # stay under v7x 64 MiB

    def resident(a):
        # Full array, constant block index -> DMA'd once, stays in VMEM across
        # all grid steps.  (pl.Buffered(1) would drop the redundant second
        # buffer, but the params are ~100 KiB total so the saving is noise.)
        return pl.BlockSpec(a.shape, lambda i: (0, 0))

    flops = 2 * batch * (state_dim * HIDDEN + HIDDEN * HIDDEN + HIDDEN * act_dim)
    bytes_accessed = (
        x.size * x.dtype.itemsize
        + sum(a.size * a.dtype.itemsize for a in (w1, b1, w2, b2, w3t, b3t))
        + batch * act_dim * 4
    )

    out_t = pl.pallas_call(
        mlp_kernel,
        out_shape=jax.ShapeDtypeStruct((act_dim, batch), jnp.float32),
        grid=grid,
        in_specs=[
            pl.BlockSpec((tb, state_dim), lambda i: (i, 0)),   # streamed x tile
            resident(w1), resident(b1),
            resident(w2), resident(b2),
            resident(w3t), resident(b3t),
        ],
        # Lane-dense output block: last dim = tb (multiple of 128 or full dim).
        out_specs=pl.BlockSpec((act_dim, tb), lambda i: (0, i)),
        compiler_params=pltpu.CompilerParams(
            dimension_semantics=("parallel",),   # megacore sharding on v7x
            vmem_limit_bytes=int(vmem_limit),
        ),
        cost_estimate=pl.CostEstimate(
            flops=flops, transcendentals=0, bytes_accessed=bytes_accessed),
    )(x, w1, b1, w2, b2, w3t, b3t)

    # TODO(synk): fuse the downstream consumer (argmax / sampler) so it reads
    # the lane-dense (act_dim, batch) result directly instead of this
    # wrapper-side un-transpose.
    # TODO(synk): optionally present x lane-densely (stream (batch/8, 128)
    # views + block-diagonal fc1) to cut the 8x lane padding of the x buffers.
    return out_t.T if transpose_back else out_t


def init_params(key, state_dim, act_dim, hidden=HIDDEN):
    """PyTorch-style init (uniform(-1/sqrt(fan_in), 1/sqrt(fan_in))).

    fc1/fc2 weights stored transposed as (in, out); fc3 stored kernel-ready as
    (act_dim, hidden) / (act_dim, 1) for the lane-dense transposed output."""
    keys = jax.random.split(key, 6)

    def linear(kw, kb, fan_in, fan_out):
        bound = 1.0 / jnp.sqrt(float(fan_in))
        w = jax.random.uniform(kw, (fan_in, fan_out), jnp.float32, -bound, bound)
        b = jax.random.uniform(kb, (1, fan_out), jnp.float32, -bound, bound)
        return w, b

    w1, b1 = linear(keys[0], keys[1], state_dim, hidden)
    w2, b2 = linear(keys[2], keys[3], hidden, hidden)
    w3, b3 = linear(keys[4], keys[5], hidden, act_dim)
    return {"w1": w1, "b1": b1, "w2": w2, "b2": b2,
            "w3t": w3.T, "b3t": b3.T}


def net_forward_ref(x, params):
    """Plain-JAX f32 reference for correctness checking."""
    h = jnp.maximum(x @ params["w1"] + params["b1"], 0.0)
    h = jnp.maximum(h @ params["w2"] + params["b2"], 0.0)
    return h @ params["w3t"].T + params["b3t"].T


if __name__ == "__main__":
    state_dim, act_dim = 16, 4

    key = jax.random.PRNGKey(0)
    key_params, key_small, key_big = jax.random.split(key, 3)
    params = init_params(key_params, state_dim, act_dim)

    # Small batch: single full-extent block, grid = 1.
    x_small = jax.random.normal(key_small, (8, state_dim), dtype=jnp.float32)
    out_small = jax.block_until_ready(net_forward(x_small, params))
    ref_small = net_forward_ref(x_small, params)
    assert out_small.shape == (8, act_dim)
    assert jnp.allclose(out_small, ref_small, atol=1e-5, rtol=1e-5), \
        "small-batch mismatch vs reference"

    # Non-tile-multiple batch with a small explicit tile: exercises the
    # multi-step grid and the masked boundary block (no wrapper padding).
    x_big = jax.random.normal(key_big, (1000, state_dim), dtype=jnp.float32)
    out_big = jax.block_until_ready(net_forward(x_big, params, block_batch=256))
    ref_big = net_forward_ref(x_big, params)
    assert out_big.shape == (1000, act_dim)
    assert jnp.allclose(out_big, ref_big, atol=1e-5, rtol=1e-5), \
        "multi-tile (masked boundary) mismatch vs reference"

    # Default large-tile config on the same input (single full-extent block).
    out_def = jax.block_until_ready(net_forward(x_big, params))
    assert jnp.allclose(out_def, ref_big, atol=1e-5, rtol=1e-5), \
        "default-tile mismatch vs reference"

    # Raw lane-dense (act_dim, batch) output for downstream fusion.
    out_t = jax.block_until_ready(
        net_forward(x_big, params, transpose_back=False))
    assert out_t.shape == (act_dim, 1000)
    assert jnp.allclose(out_t.T, ref_big, atol=1e-5, rtol=1e-5), \
        "transposed-output mismatch vs reference"

    print("KERNEL_OK")
</pallas_src>

<mosaic_0001>
module attributes {stable_mosaic.version = 11 : i64} {
  func.func @mlp_kernel(%arg0: i32, %arg1: memref<8x16xf32, #tpu.memory_space<vmem>>, %arg2: memref<16x32xf32, #tpu.memory_space<vmem>>, %arg3: memref<1x32xf32, #tpu.memory_space<vmem>>, %arg4: memref<32x32xf32, #tpu.memory_space<vmem>>, %arg5: memref<1x32xf32, #tpu.memory_space<vmem>>, %arg6: memref<4x32xf32, #tpu.memory_space<vmem>>, %arg7: memref<4x1xf32, #tpu.memory_space<vmem>>, %arg8: memref<4x8xf32, #tpu.memory_space<vmem>>) attributes {dimension_semantics = [#tpu.dimension_semantics<parallel>], iteration_bounds = array<i64: 1>, scalar_prefetch = 0 : i64, scratch_operands = 0 : i64, tpu.core_type = #tpu.core_type<tc>, window_params = [{transform_indices = @transform_0, window_bounds = array<i64: 8, 16>}, {pipeline_mode = #tpu.pipeline_mode<synchronous>, transform_indices = @transform_1, window_bounds = array<i64: 16, 32>}, {pipeline_mode = #tpu.pipeline_mode<synchronous>, transform_indices = @transform_2, window_bounds = array<i64: 1, 32>}, {pipeline_mode = #tpu.pipeline_mode<synchronous>, transform_indices = @transform_3, window_bounds = array<i64: 32, 32>}, {pipeline_mode = #tpu.pipeline_mode<synchronous>, transform_indices = @transform_4, window_bounds = array<i64: 1, 32>}, {pipeline_mode = #tpu.pipeline_mode<synchronous>, transform_indices = @transform_5, window_bounds = array<i64: 4, 32>}, {pipeline_mode = #tpu.pipeline_mode<synchronous>, transform_indices = @transform_6, window_bounds = array<i64: 4, 1>}, {transform_indices = @transform_7, window_bounds = array<i64: 4, 8>}]} {
    %c0 = arith.constant 0 : index
    %c0_0 = arith.constant 0 : index
    %0 = vector.load %arg1[%c0, %c0_0] : memref<8x16xf32, #tpu.memory_space<vmem>>, vector<8x16xf32>
    %c0_1 = arith.constant 0 : index
    %c0_2 = arith.constant 0 : index
    %1 = vector.load %arg2[%c0_1, %c0_2] : memref<16x32xf32, #tpu.memory_space<vmem>>, vector<16x32xf32>
    %cst = arith.constant dense<0.000000e+00> : vector<8x32xf32>
    %2 = tpu.matmul %0, %1, %cst {dimension_numbers = #tpu.dot_dimension_numbers<[1], [0], [0], [1], [0, 0, 1, 1], [], []>} : vector<8x16xf32>, vector<16x32xf32>, vector<8x32xf32> -> vector<8x32xf32>
    %c0_3 = arith.constant 0 : index
    %c0_4 = arith.constant 0 : index
    %3 = vector.load %arg3[%c0_3, %c0_4] : memref<1x32xf32, #tpu.memory_space<vmem>>, vector<1x32xf32>
    %4 = vector.broadcast %3 : vector<1x32xf32> to vector<8x32xf32>
    %5 = arith.addf %2, %4 : vector<8x32xf32>
    %cst_5 = arith.constant 0.000000e+00 : f32
    %6 = vector.broadcast %cst_5 : f32 to vector<8x32xf32>
    %7 = arith.maximumf %5, %6 : vector<8x32xf32>
    %c0_6 = arith.constant 0 : index
    %c0_7 = arith.constant 0 : index
    %8 = vector.load %arg4[%c0_6, %c0_7] : memref<32x32xf32, #tpu.memory_space<vmem>>, vector<32x32xf32>
    %cst_8 = arith.constant dense<0.000000e+00> : vector<8x32xf32>
    %9 = tpu.matmul %7, %8, %cst_8 {dimension_numbers = #tpu.dot_dimension_numbers<[1], [0], [0], [1], [0, 0, 1, 1], [], []>} : vector<8x32xf32>, vector<32x32xf32>, vector<8x32xf32> -> vector<8x32xf32>
    %c0_9 = arith.constant 0 : index
    %c0_10 = arith.constant 0 : index
    %10 = vector.load %arg5[%c0_9, %c0_10] : memref<1x32xf32, #tpu.memory_space<vmem>>, vector<1x32xf32>
    %11 = vector.broadcast %10 : vector<1x32xf32> to vector<8x32xf32>
    %12 = arith.addf %9, %11 : vector<8x32xf32>
    %cst_11 = arith.constant 0.000000e+00 : f32
    %13 = vector.broadcast %cst_11 : f32 to vector<8x32xf32>
    %14 = arith.maximumf %12, %13 : vector<8x32xf32>
    %c0_12 = arith.constant 0 : index
    %c0_13 = arith.constant 0 : index
    %15 = vector.load %arg6[%c0_12, %c0_13] : memref<4x32xf32, #tpu.memory_space<vmem>>, vector<4x32xf32>
    %cst_14 = arith.constant dense<0.000000e+00> : vector<4x8xf32>
    %16 = tpu.matmul %15, %14, %cst_14 {dimension_numbers = #tpu.dot_dimension_numbers<[1], [1], [0], [0], [0, 0, 1, 0], [], []>} : vector<4x32xf32>, vector<8x32xf32>, vector<4x8xf32> -> vector<4x8xf32>
    %c0_15 = arith.constant 0 : index
    %c0_16 = arith.constant 0 : index
    %17 = vector.load %arg7[%c0_15, %c0_16] : memref<4x1xf32, #tpu.memory_space<vmem>>, vector<4x1xf32>
    %18 = vector.broadcast %17 : vector<4x1xf32> to vector<4x8xf32>
    %19 = arith.addf %16, %18 : vector<4x8xf32>
    %c0_17 = arith.constant 0 : index
    %c0_18 = arith.constant 0 : index
    %20 = vector.load %arg8[%c0_17, %c0_18] : memref<4x8xf32, #tpu.memory_space<vmem>>, vector<4x8xf32>
    tpu.vector_store %arg8[%c0_17, %c0_18], %19 {strides = array<i32>} : memref<4x8xf32, #tpu.memory_space<vmem>>, vector<4x8xf32>,
    return
  }
  func.func @transform_0(%arg0: i32) -> (i32, i32) {
    %c0_i32 = arith.constant 0 : i32
    %c0_i32_0 = arith.constant 0 : i32
    return %arg0, %c0_i32 : i32, i32
  }
  func.func @transform_1(%arg0: i32) -> (i32, i32) {
    %c0_i32 = arith.constant 0 : i32
    %c0_i32_0 = arith.constant 0 : i32
    %c0_i32_1 = arith.constant 0 : i32
    return %c0_i32, %c0_i32_0 : i32, i32
  }
  func.func @transform_2(%arg0: i32) -> (i32, i32) {
    %c0_i32 = arith.constant 0 : i32
    %c0_i32_0 = arith.constant 0 : i32
    %c0_i32_1 = arith.constant 0 : i32
    return %c0_i32, %c0_i32_0 : i32, i32
  }
  func.func @transform_3(%arg0: i32) -> (i32, i32) {
    %c0_i32 = arith.constant 0 : i32
    %c0_i32_0 = arith.constant 0 : i32
    %c0_i32_1 = arith.constant 0 : i32
    return %c0_i32, %c0_i32_0 : i32, i32
  }
  func.func @transform_4(%arg0: i32) -> (i32, i32) {
    %c0_i32 = arith.constant 0 : i32
    %c0_i32_0 = arith.constant 0 : i32
    %c0_i32_1 = arith.constant 0 : i32
    return %c0_i32, %c0_i32_0 : i32, i32
  }
  func.func @transform_5(%arg0: i32) -> (i32, i32) {
    %c0_i32 = arith.constant 0 : i32
    %c0_i32_0 = arith.constant 0 : i32
    %c0_i32_1 = arith.constant 0 : i32
    return %c0_i32, %c0_i32_0 : i32, i32
  }
  func.func @transform_6(%arg0: i32) -> (i32, i32) {
    %c0_i32 = arith.constant 0 : i32
    %c0_i32_0 = arith.constant 0 : i32
    %c0_i32_1 = arith.constant 0 : i32
    return %c0_i32, %c0_i32_0 : i32, i32
  }
  func.func @transform_7(%arg0: i32) -> (i32, i32) {
    %c0_i32 = arith.constant 0 : i32
    %c0_i32_0 = arith.constant 0 : i32
    return %c0_i32, %arg0 : i32, i32
  }
}

</mosaic_0001>

<llo_original>
// kernel: tpu_custom_call.1
$region0: #{tpu_custom_call.1}
  #allocation0 [shape = 'u32[]', space=smem, size = 0x4, offset = 0x4, fixed_abs, tag = 'smem constant byte address 0x4 - core index']
  #allocation1 [shape = 'u32[72,128]{1,0:T(1,128)}', space=vmem, size = 0x9000, scoped, tag = 'internal scratch']
  %s0 = inlined_call_operand.hbm [shape: f32[8,16], index: 0, kind: input, shape index: {}]
  %s1 = inlined_call_operand.hbm [shape: f32[16,32], index: 1, kind: input, shape index: {}]
  %s2 = inlined_call_operand.vmem [shape: f32[1,32], index: 2, kind: input, shape index: {}]
  %s3 = inlined_call_operand.hbm [shape: f32[32,32], index: 3, kind: input, shape index: {}]
  %s4 = inlined_call_operand.vmem [shape: f32[1,32], index: 4, kind: input, shape index: {}]
  %s5 = inlined_call_operand.vmem [shape: f32[4,32], index: 5, kind: input, shape index: {}]
  %s6 = inlined_call_operand.vmem [shape: f32[4,1], index: 6, kind: input, shape index: {}]
  %s7 = inlined_call_operand.hbm [shape: f32[4,8], index: 7, kind: output, shape index: {}]
  %s8 = sld [smem:[#allocation0]]
  $region50: #{tpu_custom_call.1} parent=0
    _
  %s10 = ssub.s32 1, %s8
  %s11 = scalar_select 0, %s10, %s8
  $region1: #{tpu_custom_call.1} parent=0
    #allocation2 [shape = 'u8[4096]{0}', space=vmem, size = 0x1000, scoped, tag = 'input window, operand 0, single buffered']
    #allocation3 [shape = 's32[1]{0}', space=sflag, size = 0x4, scoped, tag = 'scoped memory for tpu_custom_call.1']
    #allocation4 [shape = 's32[1]{0}', space=sflag, size = 0x4, scoped, tag = 'scoped memory for tpu_custom_call.1']
    #allocation5 [shape = 'u8[8192]{0}', space=vmem, size = 0x2000, scoped, tag = 'input window, operand 1, single buffered']
    #allocation6 [shape = 's32[1]{0}', space=sflag, size = 0x4, scoped, tag = 'scoped memory for tpu_custom_call.1']
    #allocation7 [shape = 'u8[16384]{0}', space=vmem, size = 0x4000, scoped, tag = 'input window, operand 3, single buffered']
    #allocation8 [shape = 'u8[2048]{0}', space=vmem, size = 0x800, scoped, tag = 'output window, operand 0, single buffered']
    %12 = vsyncpa [#allocation3], 0
    %13 = vsyncpa [#allocation6], 0
    %14 = vsyncpa [#allocation4], 0
    // Predicated region
    $region2: #{tpu_custom_call.1} parent=1 // pred_check
      _
    $region3: #{tpu_custom_call.1} parent=1 // pred_check_branch
      %16 = sbr.rel (0) target = $region5
    $region4: #{tpu_custom_call.1} parent=1 // pred_region
      %18 = vsyncadd [#allocation3], 0
      %s20 = sshll.u32 %s0, 4
      %s21 = int_to_ptr.hbm [resolvable:$true] %s20
      %s22 = sshll.u32 [#allocation2], 4
      %s23 = int_to_ptr.vmem [resolvable:$true] %s22
      %25 = dma.hbm_to_vmem [thread:$0]  %s21, 128, %s23, [#allocation3]
    $region5: #{tpu_custom_call.1} parent=1 // pred_fallthru
      _
    // Predicated region
    $region6: #{tpu_custom_call.1} parent=1 // pred_check
      _
    $region7: #{tpu_custom_call.1} parent=1 // pred_check_branch
      %27 = sbr.rel (0) target = $region9
    $region8: #{tpu_custom_call.1} parent=1 // pred_region
      %29 = vsyncadd [#allocation6], 0
      %s30 = sshll.u32 %s1, 4
      %s31 = int_to_ptr.hbm [resolvable:$true] %s30
      %s32 = sshll.u32 [#allocation5], 4
      %s33 = int_to_ptr.vmem [resolvable:$true] %s32
      %38 = dma.hbm_to_vmem [thread:$0]  %s31, 256, %s33, [#allocation6], 128, 128, 8
    $region9: #{tpu_custom_call.1} parent=1 // pred_fallthru
      _
    // Predicated region
    $region10: #{tpu_custom_call.1} parent=1 // pred_check
      _
    $region11: #{tpu_custom_call.1} parent=1 // pred_check_branch
      %40 = sbr.rel (0) target = $region13
    $region12: #{tpu_custom_call.1} parent=1 // pred_region
      _
    $region13: #{tpu_custom_call.1} parent=1 // pred_fallthru
      _
    // Predicated region
    $region14: #{tpu_custom_call.1} parent=1 // pred_check
      _
    $region15: #{tpu_custom_call.1} parent=1 // pred_check_branch
      %42 = sbr.rel (0) target = $region17
    $region16: #{tpu_custom_call.1} parent=1 // pred_region
      %44 = vsyncadd [#allocation6], 0
      %s45 = sshll.u32 %s3, 4
      %s46 = int_to_ptr.hbm [resolvable:$true] %s45
      %s47 = sshll.u32 [#allocation7], 4
      %s48 = int_to_ptr.vmem [resolvable:$true] %s47
      %53 = dma.hbm_to_vmem [thread:$0]  %s46, 512, %s48, [#allocation6], 128, 128, 8
    $region17: #{tpu_custom_call.1} parent=1 // pred_fallthru
      _
    // Predicated region
    $region18: #{tpu_custom_call.1} parent=1 // pred_check
      _
    $region19: #{tpu_custom_call.1} parent=1 // pred_check_branch
      %55 = sbr.rel (0) target = $region21
    $region20: #{tpu_custom_call.1} parent=1 // pred_region
      _
    $region21: #{tpu_custom_call.1} parent=1 // pred_fallthru
      _
    // Predicated region
    $region22: #{tpu_custom_call.1} parent=1 // pred_check
      _
    $region23: #{tpu_custom_call.1} parent=1 // pred_check_branch
      %57 = sbr.rel (0) target = $region25
    $region24: #{tpu_custom_call.1} parent=1 // pred_region
      _
    $region25: #{tpu_custom_call.1} parent=1 // pred_fallthru
      _
    // Predicated region
    $region26: #{tpu_custom_call.1} parent=1 // pred_check
      _
    $region27: #{tpu_custom_call.1} parent=1 // pred_check_branch
      %59 = sbr.rel (0) target = $region29
    $region28: #{tpu_custom_call.1} parent=1 // pred_region
      _
    $region29: #{tpu_custom_call.1} parent=1 // pred_fallthru
      _
    // Predicated region
    $region30: #{tpu_custom_call.1} parent=1 // pred_check
      _
    $region31: #{tpu_custom_call.1} parent=1 // pred_check_branch
      %61 = sbr.rel (0) target = $region33
    $region32: #{tpu_custom_call.1} parent=1 // pred_region
      %63 = dma.done [#allocation3], 128
    $region33: #{tpu_custom_call.1} parent=1 // pred_fallthru
      _
    // Predicated region
    $region34: #{tpu_custom_call.1} parent=1 // pred_check
      _
    $region35: #{tpu_custom_call.1} parent=1 // pred_check_branch
      %65 = sbr.rel (0) target = $region37
    $region36: #{tpu_custom_call.1} parent=1 // pred_region
      %67 = dma.done [#allocation6], 256
    $region37: #{tpu_custom_call.1} parent=1 // pred_fallthru
      _
    // Predicated region
    $region38: #{tpu_custom_call.1} parent=1 // pred_check
      _
    $region39: #{tpu_custom_call.1} parent=1 // pred_check_branch
      %69 = sbr.rel (0) target = $region41
    $region40: #{tpu_custom_call.1} parent=1 // pred_region
      %71 = dma.done [#allocation6], 512
    $region41: #{tpu_custom_call.1} parent=1 // pred_fallthru
      _
    %v72 = vld [vmem:[#allocation2] sm:$0xff]
    %v73 = vld [vmem:[#allocation5] sm:$0xff]
    %v74 = vld [vmem:[#allocation5 + $0x8] sm:$0xff]
    %v75 = vld [vmem:[%s2] sm:$0x1]
    %v77 = vperm.slane %v75, 0
    %vm79 = vcmask 130048
    %v81 = vsel %vm79, %v72, 0
    %83 = vmatpush.msra.mxu0 0.0
    %84 = vmatpush.msra.mxu0 0.0
    %85 = vmatpush.msra.mxu0 0.0
    %86 = vmatpush.msra.mxu0 0.0
    %87 = vmatpush.msra.mxu0 0.0
    %88 = vmatpush.msra.mxu0 0.0
    %89 = vmatpush.msra.mxu0 0.0
    %90 = vmatpush.msra.mxu0 0.0
    %91 = vmatpush.msra.mxu0 0.0
    %92 = vmatpush.msra.mxu0 0.0
    %93 = vmatpush.msra.mxu0 0.0
    %94 = vmatpush.msra.mxu0 0.0
    %95 = vmatpush.msra.mxu0 0.0
    %96 = vmatpush.msra.mxu0 0.0
    %97 = vmatpush.msra.mxu0 %v74
    %98 = vmatpush.msra.mxu0 %v73
    %99 = vmatmul.f32.gmra.mxu0 %v81
    %v100 = vpop.f32.mrf.mxu0
    %v101 = vadd.f32 %v77, %v100
    %102 = vdwg.mxu0
    %v103 = vmax.f32 %v101, 0.0
    %v104 = vld [vmem:[#allocation7] sm:$0xff]
    %v105 = vld [vmem:[#allocation7 + $0x8] sm:$0xff]
    %v106 = vld [vmem:[#allocation7 + $0x10] sm:$0xff]
    %v107 = vld [vmem:[#allocation7 + $0x18] sm:$0xff]
    %v108 = vld [vmem:[%s4] sm:$0x1]
    %v110 = vperm.slane %v108, 0
    %vm112 = vcmask 261120
    %v114 = vsel %vm112, %v103, 0
    %116 = vmatpush.msra.mxu0 0.0
    %117 = vmatpush.msra.mxu0 0.0
    %118 = vmatpush.msra.mxu0 0.0
    %119 = vmatpush.msra.mxu0 0.0
    %120 = vmatpush.msra.mxu0 0.0
    %121 = vmatpush.msra.mxu0 0.0
    %122 = vmatpush.msra.mxu0 0.0
    %123 = vmatpush.msra.mxu0 0.0
    %124 = vmatpush.msra.mxu0 0.0
    %125 = vmatpush.msra.mxu0 0.0
    %126 = vmatpush.msra.mxu0 0.0
    %127 = vmatpush.msra.mxu0 0.0
    %128 = vmatpush.msra.mxu0 %v107
    %129 = vmatpush.msra.mxu0 %v106
    %130 = vmatpush.msra.mxu0 %v105
    %131 = vmatpush.msra.mxu0 %v104
    %132 = vmatmul.f32.gmra.mxu0 %v114
    %v133 = vpop.f32.mrf.mxu0
    %v134 = vadd.f32 %v110, %v133
    %135 = vdwg.mxu0
    %v136 = vmax.f32 %v134, 0.0
    %v137 = vld [vmem:[%s5] sm:$0xf]
    %v138 = vld [vmem:[%s6] sm:$0xf]
    %140 = vset.pattern.permute.xlu0 0
    %141 = vperm.xlu0 %140, %v138
    %v142 = vpop.permute.xlu0 %141
    %v145 = vsel %vm112, %v137, 0
    %v148 = vsel %vm112, %v136, 0
    %150 = vmatpush.xpose.msra.mxu0 0.0
    %151 = vmatpush.xpose.msra.mxu0 0.0
    %152 = vmatpush.xpose.msra.mxu0 0.0
    %153 = vmatpush.xpose.msra.mxu0 0.0
    %154 = vmatpush.xpose.msra.mxu0 0.0
    %155 = vmatpush.xpose.msra.mxu0 0.0
    %156 = vmatpush.xpose.msra.mxu0 0.0
    %157 = vmatpush.xpose.msra.mxu0 0.0
    %158 = vmatpush.xpose.msra.mxu0 0.0
    %159 = vmatpush.xpose.msra.mxu0 0.0
    %160 = vmatpush.xpose.msra.mxu0 0.0
    %161 = vmatpush.xpose.msra.mxu0 0.0
    %162 = vmatpush.xpose.msra.mxu0 0.0
    %163 = vmatpush.xpose.msra.mxu0 0.0
    %164 = vmatpush.xpose.msra.mxu0 0.0
    %165 = vmatpush.xpose.msra.mxu0 %v148
    %166 = vmatmul.f32.gmra.mxu0 %v145
    %v167 = vpop.f32.mrf.mxu0
    %v168 = vadd.f32 %v142, %v167
    %169 = vdwg.mxu0
    %vm170 = vcmask 60416
    %171 = vst.msk [vmem:[#allocation8] sm:$0xf] %vm170, %v168
    // Predicated region
    $region42: #{tpu_custom_call.1} parent=1 // pred_check
      _
    $region43: #{tpu_custom_call.1} parent=1 // pred_check_branch
      %173 = sbr.rel (0) target = $region45
    $region44: #{tpu_custom_call.1} parent=1 // pred_region
      %175 = vsyncadd [#allocation4], 0
      %s177 = sshll.u32 [#allocation8], 4
      %s178 = int_to_ptr.vmem [resolvable:$true] %s177
      %s179 = sshll.u32 %s7, 4
      %s180 = int_to_ptr.hbm [resolvable:$true] %s179
      %182 = dma.vmem_to_hbm [thread:$0]  %s178, 64, %s180, [#allocation4]
    $region45: #{tpu_custom_call.1} parent=1 // pred_fallthru
      _
    // Predicated region
    $region46: #{tpu_custom_call.1} parent=1 // pred_check
      _
    $region47: #{tpu_custom_call.1} parent=1 // pred_check_branch
      %184 = sbr.rel (0) target = $region49
    $region48: #{tpu_custom_call.1} parent=1 // pred_region
      %186 = dma.done [#allocation4], 64
    $region49: #{tpu_custom_call.1} parent=1 // pred_fallthru
      _
    %187 = vsyncpa [#allocation3], 1
    %188 = vsyncpa [#allocation6], 1
    %189 = vsyncpa [#allocation4], 1

</llo_original>
